<compile_context>
chip_gen: v5e
topology: v5e:2x2
jax: 0.10.0
libtpu: 0.0.40
codegen_flags: <defaults>
</compile_context>

<pallas_src>
import functools
import math

import jax
import jax.numpy as jnp
from jax import lax
from jax.experimental import pallas as pl
from jax.experimental.pallas import tpu as pltpu


# ----------------------------- tiling helpers ------------------------------

def _round_up(x, m):
    return ((x + m - 1) // m) * m


def _largest_divisor_leq(n, cap, multiple=1):
    cap = max(1, min(n, cap))
    for d in range(cap, 0, -1):
        if n % d == 0 and d % multiple == 0:
            return d
    return None


def _vmem_capacity_bytes():
    try:
        return int(pltpu.get_tpu_info().vmem_capacity_bytes)
    except Exception:
        return 64 * 1024 * 1024          # conservative default: v7x per-TC VMEM


def _choose_q_tile(Td, cap):
    """Return (tq, Td_pad). Prefer a divisor of Td (no padding)."""
    if Td <= cap:
        return Td, Td
    d = _largest_divisor_leq(Td, cap, multiple=8)
    if d is not None and d >= min(64, cap):
        return d, Td
    tq = _round_up(cap, 8)
    return tq, _round_up(Td, tq)


def _choose_te_tile(Te, cap):
    """Return tke dividing Te (falls back to full extent)."""
    if Te <= cap:
        return Te
    d = _largest_divisor_leq(Te, cap, multiple=8)
    if d is not None and d >= min(128, cap):
        return d
    return Te


# ----------------------------- kernel bodies -------------------------------

def _attn_full_kernel(*refs, has_lengths, scaled, inv_scale):
    """Full-Te softmax; writes contexts AND alignments."""
    if has_lengths:
        q_ref, m_ref, len_ref, ctx_ref, attn_ref = refs
    else:
        q_ref, m_ref, ctx_ref, attn_ref = refs

    q = q_ref[...]
    mem = m_ref[...]
    if scaled:
        q = q * inv_scale                              # fold scale into small Q tile

    s = jnp.einsum("btd,bsd->bts", q, mem, preferred_element_type=jnp.float32)

    if has_lengths:
        col = lax.broadcasted_iota(jnp.int32, (1, 1, s.shape[2]), 2)
        s = jnp.where(col >= len_ref[...], -jnp.inf, s)     # broadcast over tq

    s_max = jnp.max(s, axis=-1, keepdims=True)
    e = jnp.exp(s - s_max)
    denom = jnp.sum(e, axis=-1, keepdims=True)
    a = e * (1.0 / denom)                                # exact reciprocal (per row)
    a_low = a.astype(mem.dtype)                          # single down-cast, reused
    attn_ref[...] = a_low.astype(attn_ref.dtype)

    ctx = jnp.einsum("bts,bsd->btd", a_low, mem, preferred_element_type=jnp.float32)
    ctx_ref[...] = ctx.astype(ctx_ref.dtype)


def _attn_flash_kernel(*refs, has_lengths, scaled, inv_scale, tke):
    """Te-tiled online softmax; writes contexts only."""
    if has_lengths:
        q_ref, m_ref, len_ref, ctx_ref, m_sc, l_sc, acc_sc = refs
    else:
        q_ref, m_ref, ctx_ref, m_sc, l_sc, acc_sc = refs

    te = pl.program_id(2)

    @pl.when(te == 0)
    def _():
        m_sc[...] = jnp.full_like(m_sc, -jnp.inf)
        l_sc[...] = jnp.zeros_like(l_sc)
        acc_sc[...] = jnp.zeros_like(acc_sc)

    q = q_ref[...]
    mem = m_ref[...]
    if scaled:
        q = q * inv_scale

    s = jnp.einsum("btd,bsd->bts", q, mem, preferred_element_type=jnp.float32)
    if has_lengths:
        col = te * tke + lax.broadcasted_iota(jnp.int32, (1, 1, tke), 2)
        s = jnp.where(col >= len_ref[...], -jnp.inf, s)

    m_prev = m_sc[...]
    m_new = jnp.maximum(m_prev, jnp.max(s, axis=-1, keepdims=True))
    alpha = jnp.exp(m_prev - m_new)
    p = jnp.exp(s - m_new)
    l_sc[...] = alpha * l_sc[...] + jnp.sum(p, axis=-1, keepdims=True)
    acc_sc[...] = alpha * acc_sc[...] + jnp.einsum(
        "bts,bsd->btd", p.astype(mem.dtype), mem, preferred_element_type=jnp.float32)
    m_sc[...] = m_new

    @pl.when(te == pl.num_programs(2) - 1)
    def _():
        ctx = acc_sc[...] * (1.0 / l_sc[...])            # exact reciprocal (per row)
        ctx_ref[...] = ctx.astype(ctx_ref.dtype)


# -------------------------------- wrapper -----------------------------------

def dot_product_attention(queries, memory, lengths=None, *, scaled=False,
                          return_alignments=True,
                          max_q_tile=256, max_te_tile=512,
                          vmem_budget_bytes=None, vmem_limit_bytes=None):
    """queries: [N,Td,D], memory: [N,Te,D], lengths: optional int [N]."""
    N, Td, D = queries.shape
    Nm, Te, Dm = memory.shape
    assert Nm == N and Dm == D, "queries/memory batch or feature mismatch"

    out_dtype = queries.dtype
    itemsize = jnp.dtype(out_dtype).itemsize
    has_lengths = lengths is not None
    inv_scale = float(1.0 / math.sqrt(D)) if scaled else 1.0

    # --- VMEM budget & limit derived from hardware capacity ---
    cap = _vmem_capacity_bytes()                       # 64 MiB v7x, 128 MiB v5e/v6e
    if vmem_limit_bytes is None:
        vmem_limit_bytes = min(int(cap * 0.75), 100 * 1024 * 1024)
    if vmem_budget_bytes is None:
        vmem_budget_bytes = int(cap * 0.40)

    # --- tile choices ---
    tq, Td_pad = _choose_q_tile(Td, max_q_tile)
    t_tiles = Td_pad // tq
    tke = Te if return_alignments else _choose_te_tile(Te, max_te_tile)
    te_tiles = Te // tke

    # --- per-batch VMEM footprint: blocks (double-buffered) + f32 temps ---
    blk = (tq * D + tke * D + tq * D) * itemsize * 2            # q / memory / ctx
    if return_alignments:
        blk += tq * Te * itemsize * 2                            # alignments block
    f32_tmp = 3 * tq * tke * 4 + 2 * tq * D * 4                  # s, e/p, a + f32 ctx
    scratch_b = 0 if return_alignments else (tq * (D + 2)) * 4   # m_i, l_i, acc
    per_batch = blk + f32_tmp + scratch_b

    bblk = max(1, vmem_budget_bytes // max(per_batch, 1))
    bblk = int(min(bblk, 64, N))
    # Keep >= 2 program instances on the parallel axes (v7x dual-TC / megacore).
    if t_tiles == 1 and N >= 2:
        bblk = min(bblk, max(1, N // 2))
    bblk = _largest_divisor_leq(N, bblk) or 1                    # no batch padding
    b_tiles = N // bblk

    # --- only the query-time axis may need padding ---
    q_in = queries
    if Td_pad != Td:
        q_in = jnp.pad(queries, ((0, 0), (0, Td_pad - Td), (0, 0)))

    inputs = [q_in, memory]
    cparams = pltpu.CompilerParams(
        dimension_semantics=(("parallel", "parallel") if return_alignments
                             else ("parallel", "parallel", "arbitrary")),
        vmem_limit_bytes=int(vmem_limit_bytes))

    if return_alignments:
        grid = (b_tiles, t_tiles)
        in_specs = [
            pl.BlockSpec((bblk, tq, D), lambda b, t: (b, t, 0)),     # queries
            pl.BlockSpec((bblk, Te, D), lambda b, t: (b, 0, 0)),     # memory
        ]
        if has_lengths:
            inputs.append(lengths.astype(jnp.int32).reshape(N, 1, 1))
            in_specs.append(pl.BlockSpec((bblk, 1, 1), lambda b, t: (b, 0, 0)))
        kernel = functools.partial(_attn_full_kernel, has_lengths=has_lengths,
                                   scaled=scaled, inv_scale=inv_scale)
        out_specs = [
            pl.BlockSpec((bblk, tq, D), lambda b, t: (b, t, 0)),     # contexts
            pl.BlockSpec((bblk, tq, Te), lambda b, t: (b, t, 0)),    # alignments
        ]
        out_shape = (jax.ShapeDtypeStruct((N, Td_pad, D), out_dtype),
                     jax.ShapeDtypeStruct((N, Td_pad, Te), out_dtype))
        scratch_shapes = ()
    else:
        grid = (b_tiles, t_tiles, te_tiles)
        in_specs = [
            pl.BlockSpec((bblk, tq, D), lambda b, t, k: (b, t, 0)),   # queries
            pl.BlockSpec((bblk, tke, D), lambda b, t, k: (b, k, 0)),  # memory tile
        ]
        if has_lengths:
            inputs.append(lengths.astype(jnp.int32).reshape(N, 1, 1))
            in_specs.append(pl.BlockSpec((bblk, 1, 1), lambda b, t, k: (b, 0, 0)))
        kernel = functools.partial(_attn_flash_kernel, has_lengths=has_lengths,
                                   scaled=scaled, inv_scale=inv_scale, tke=tke)
        out_specs = pl.BlockSpec((bblk, tq, D), lambda b, t, k: (b, t, 0))
        out_shape = jax.ShapeDtypeStruct((N, Td_pad, D), out_dtype)
        scratch_shapes = [
            pltpu.VMEM((bblk, tq, 1), jnp.float32),   # running max
            pltpu.VMEM((bblk, tq, 1), jnp.float32),   # running denom
            pltpu.VMEM((bblk, tq, D), jnp.float32),   # context accumulator
        ]

    result = pl.pallas_call(
        kernel,
        grid=grid,
        in_specs=in_specs,
        out_specs=out_specs,
        out_shape=out_shape,
        scratch_shapes=scratch_shapes,
        compiler_params=cparams,
    )(*inputs)

    if return_alignments:
        contexts, alignments = result
        if Td_pad != Td:
            contexts = contexts[:, :Td]
            alignments = alignments[:, :Td]
        return contexts, alignments
    contexts = result
    if Td_pad != Td:
        contexts = contexts[:, :Td]
    return contexts


# ------------------------------- reference ----------------------------------

def _reference(queries, memory, lengths, scaled):
    D = queries.shape[-1]
    Te = memory.shape[1]
    w = jnp.einsum("ntd,nsd->nts", queries.astype(jnp.float32),
                   memory.astype(jnp.float32))
    if scaled:
        w = w / jnp.sqrt(jnp.float32(D))
    if lengths is not None:
        mask = jnp.arange(Te)[None, :] >= lengths[:, None]
        w = jnp.where(mask[:, None, :], -jnp.inf, w)
    a = jax.nn.softmax(w, axis=-1)
    c = jnp.einsum("nts,nsd->ntd", a, memory.astype(jnp.float32))
    return c, a


if __name__ == "__main__":
    key = jax.random.PRNGKey(0)
    k1, k2 = jax.random.split(key)

    N, Td, Te, D = 2, 8, 16, 32
    queries = jax.random.normal(k1, (N, Td, D), dtype=jnp.float32)
    memory = jax.random.normal(k2, (N, Te, D), dtype=jnp.float32)
    lengths = jnp.array([16, 11], dtype=jnp.int32)

    # 1) masked + scaled  (set_memory(encoder_output, lengths), scaled=True)
    ctx, attn = dot_product_attention(queries, memory, lengths, scaled=True)
    jax.block_until_ready((ctx, attn))
    ref_c, ref_a = _reference(queries, memory, lengths, scaled=True)
    assert jnp.allclose(ctx, ref_c, atol=2e-3, rtol=2e-3), "contexts mismatch"
    assert jnp.allclose(attn, ref_a, atol=2e-3, rtol=2e-3), "alignments mismatch"

    # 2) unmasked + unscaled  (set_memory without lengths)
    ctx2, attn2 = dot_product_attention(queries, memory, None, scaled=False)
    jax.block_until_ready((ctx2, attn2))
    ref_c2, ref_a2 = _reference(queries, memory, None, scaled=False)
    assert jnp.allclose(ctx2, ref_c2, atol=2e-3, rtol=2e-3), "contexts (no mask) mismatch"
    assert jnp.allclose(attn2, ref_a2, atol=2e-3, rtol=2e-3), "alignments (no mask) mismatch"

    # 3) contexts-only fast path: Te-tiled online softmax (2 encoder-time tiles)
    ctx3 = dot_product_attention(queries, memory, lengths, scaled=True,
                                 return_alignments=False, max_te_tile=8)
    jax.block_until_ready(ctx3)
    assert jnp.allclose(ctx3, ref_c, atol=2e-3, rtol=2e-3), "flash contexts mismatch"

    # 4) contexts-only, unmasked
    ctx4 = dot_product_attention(queries, memory, None, scaled=False,
                                 return_alignments=False, max_te_tile=8)
    jax.block_until_ready(ctx4)
    assert jnp.allclose(ctx4, ref_c2, atol=2e-3, rtol=2e-3), "flash contexts (no mask) mismatch"

    print("KERNEL_OK")
</pallas_src>

<mosaic_0001>
module attributes {stable_mosaic.version = 11 : i64} {
  func.func @_attn_full_kernel(%arg0: i32, %arg1: i32, %arg2: memref<1x8x32xf32, #tpu.memory_space<vmem>>, %arg3: memref<1x16x32xf32, #tpu.memory_space<vmem>>, %arg4: memref<1x1x1xi32, #tpu.memory_space<vmem>>, %arg5: memref<1x8x32xf32, #tpu.memory_space<vmem>>, %arg6: memref<1x8x16xf32, #tpu.memory_space<vmem>>) attributes {dimension_semantics = [#tpu.dimension_semantics<parallel>, #tpu.dimension_semantics<parallel>], iteration_bounds = array<i64: 2, 1>, scalar_prefetch = 0 : i64, scratch_operands = 0 : i64, tpu.core_type = #tpu.core_type<tc>, window_params = [{transform_indices = @transform_0, window_bounds = array<i64: 1, 8, 32>}, {transform_indices = @transform_1, window_bounds = array<i64: 1, 16, 32>}, {transform_indices = @transform_2, window_bounds = array<i64: 1, 1, 1>}, {transform_indices = @transform_3, window_bounds = array<i64: 1, 8, 32>}, {transform_indices = @transform_4, window_bounds = array<i64: 1, 8, 16>}]} {
    %c0 = arith.constant 0 : index
    %c0_0 = arith.constant 0 : index
    %c0_1 = arith.constant 0 : index
    %0 = vector.load %arg2[%c0, %c0_0, %c0_1] : memref<1x8x32xf32, #tpu.memory_space<vmem>>, vector<1x8x32xf32>
    %c0_2 = arith.constant 0 : index
    %c0_3 = arith.constant 0 : index
    %c0_4 = arith.constant 0 : index
    %1 = vector.load %arg3[%c0_2, %c0_3, %c0_4] : memref<1x16x32xf32, #tpu.memory_space<vmem>>, vector<1x16x32xf32>
    %cst = arith.constant 0.176776692 : f32
    %2 = vector.broadcast %cst : f32 to vector<1x8x32xf32>
    %3 = arith.mulf %0, %2 : vector<1x8x32xf32>
    "tpu.trace_start"() <{level = 10 : i32, message = "btd,bsd->bts"}> : () -> ()
    %cst_5 = arith.constant dense<0.000000e+00> : vector<1x8x16xf32>
    %4 = tpu.matmul %3, %1, %cst_5 {dimension_numbers = #tpu.dot_dimension_numbers<[2], [2], [1], [1], [0, 0, 0, 1, 1, 1], [0], [0]>} : vector<1x8x32xf32>, vector<1x16x32xf32>, vector<1x8x16xf32> -> vector<1x8x16xf32>
    "tpu.trace_stop"() : () -> ()
    %5 = tpu.iota {dimensions = array<i32: 2>} : vector<1x1x16xi32>
    %c0_6 = arith.constant 0 : index
    %c0_7 = arith.constant 0 : index
    %c0_8 = arith.constant 0 : index
    %6 = vector.load %arg4[%c0_6, %c0_7, %c0_8] : memref<1x1x1xi32, #tpu.memory_space<vmem>>, vector<1x1x1xi32>
    %7 = vector.broadcast %6 : vector<1x1x1xi32> to vector<1x1x16xi32>
    %8 = arith.cmpi sge, %5, %7 : vector<1x1x16xi32>
    %cst_9 = arith.constant 0xFF800000 : f32
    %9 = vector.shape_cast %8 : vector<1x1x16xi1> to vector<1x1x16xi1>
    %10 = vector.broadcast %9 : vector<1x1x16xi1> to vector<1x8x16xi1>
    %11 = vector.broadcast %cst_9 : f32 to vector<1x8x16xf32>
    %12 = arith.select %10, %11, %4 : vector<1x8x16xi1>, vector<1x8x16xf32>
    %cst_10 = arith.constant dense<0xFF800000> : vector<1x8xf32>
    %13 = vector.multi_reduction <maximumf>, %12, %cst_10 [2] : vector<1x8x16xf32> to vector<1x8xf32>
    %14 = vector.shape_cast %13 : vector<1x8xf32> to vector<1x8x1xf32>
    %15 = vector.broadcast %14 : vector<1x8x1xf32> to vector<1x8x16xf32>
    %16 = arith.subf %12, %15 : vector<1x8x16xf32>
    %17 = math.exp %16 : vector<1x8x16xf32>
    %cst_11 = arith.constant dense<0.000000e+00> : vector<1x8xf32>
    %18 = vector.multi_reduction <add>, %17, %cst_11 [2] : vector<1x8x16xf32> to vector<1x8xf32>
    %19 = vector.shape_cast %18 : vector<1x8xf32> to vector<1x8x1xf32>
    %cst_12 = arith.constant 1.000000e+00 : f32
    %20 = vector.broadcast %cst_12 : f32 to vector<1x8x1xf32>
    %21 = arith.divf %20, %19 : vector<1x8x1xf32>
    %22 = vector.broadcast %21 : vector<1x8x1xf32> to vector<1x8x16xf32>
    %23 = arith.mulf %17, %22 : vector<1x8x16xf32>
    %c0_13 = arith.constant 0 : index
    %c0_14 = arith.constant 0 : index
    %c0_15 = arith.constant 0 : index
    %24 = vector.load %arg6[%c0_13, %c0_14, %c0_15] : memref<1x8x16xf32, #tpu.memory_space<vmem>>, vector<1x8x16xf32>
    tpu.vector_store %arg6[%c0_13, %c0_14, %c0_15], %23 {strides = array<i32>} : memref<1x8x16xf32, #tpu.memory_space<vmem>>, vector<1x8x16xf32>,
    "tpu.trace_start"() <{level = 10 : i32, message = "bts,bsd->btd"}> : () -> ()
    %cst_16 = arith.constant dense<0.000000e+00> : vector<1x8x32xf32>
    %25 = tpu.matmul %23, %1, %cst_16 {dimension_numbers = #tpu.dot_dimension_numbers<[2], [1], [1], [2], [0, 0, 0, 1, 1, 2], [0], [0]>} : vector<1x8x16xf32>, vector<1x16x32xf32>, vector<1x8x32xf32> -> vector<1x8x32xf32>
    "tpu.trace_stop"() : () -> ()
    %c0_17 = arith.constant 0 : index
    %c0_18 = arith.constant 0 : index
    %c0_19 = arith.constant 0 : index
    %26 = vector.load %arg5[%c0_17, %c0_18, %c0_19] : memref<1x8x32xf32, #tpu.memory_space<vmem>>, vector<1x8x32xf32>
    tpu.vector_store %arg5[%c0_17, %c0_18, %c0_19], %25 {strides = array<i32>} : memref<1x8x32xf32, #tpu.memory_space<vmem>>, vector<1x8x32xf32>,
    return
  }
  func.func @transform_0(%arg0: i32, %arg1: i32) -> (i32, i32, i32) {
    %c0_i32 = arith.constant 0 : i32
    %c0_i32_0 = arith.constant 0 : i32
    return %arg0, %arg1, %c0_i32 : i32, i32, i32
  }
  func.func @transform_1(%arg0: i32, %arg1: i32) -> (i32, i32, i32) {
    %c0_i32 = arith.constant 0 : i32
    %c0_i32_0 = arith.constant 0 : i32
    %c0_i32_1 = arith.constant 0 : i32
    return %arg0, %c0_i32, %c0_i32_0 : i32, i32, i32
  }
  func.func @transform_2(%arg0: i32, %arg1: i32) -> (i32, i32, i32) {
    %c0_i32 = arith.constant 0 : i32
    %c0_i32_0 = arith.constant 0 : i32
    %c0_i32_1 = arith.constant 0 : i32
    return %arg0, %c0_i32, %c0_i32_0 : i32, i32, i32
  }
  func.func @transform_3(%arg0: i32, %arg1: i32) -> (i32, i32, i32) {
    %c0_i32 = arith.constant 0 : i32
    %c0_i32_0 = arith.constant 0 : i32
    return %arg0, %arg1, %c0_i32 : i32, i32, i32
  }
  func.func @transform_4(%arg0: i32, %arg1: i32) -> (i32, i32, i32) {
    %c0_i32 = arith.constant 0 : i32
    %c0_i32_0 = arith.constant 0 : i32
    return %arg0, %arg1, %c0_i32 : i32, i32, i32
  }
}

</mosaic_0001>

<llo_original>
// kernel: tpu_custom_call.1
$region0: #{tpu_custom_call.1}
  #allocation0 [shape = 'u32[]', space=smem, size = 0x4, offset = 0x4, fixed_abs, tag = 'smem constant byte address 0x4 - core index']
  #allocation1 [shape = 'u32[72,128]{1,0:T(1,128)}', space=vmem, size = 0x9000, scoped, tag = 'internal scratch']
  %s0 = inlined_call_operand.hbm [shape: f32[2,8,32], index: 0, kind: input, shape index: {}]
  %s1 = inlined_call_operand.hbm [shape: f32[2,16,32], index: 1, kind: input, shape index: {}]
  %s2 = inlined_call_operand.vmem [shape: s32[2,1,1], index: 2, kind: input, shape index: {}]
  %s3 = inlined_call_operand.hbm [shape: f32[2,8,32], index: 3, kind: output, shape index: {0}]
  %s4 = inlined_call_operand.hbm [shape: f32[2,8,16], index: 4, kind: output, shape index: {1}]
  %5 = xla_tuple %s3, %s4
  %s6 = sld [smem:[#allocation0]]
  $region61: #{tpu_custom_call.1} parent=0
    _
  %s8 = ssub.s32 1, %s6
  %s9 = scalar_select 0, %s8, %s6
  $region1: #{tpu_custom_call.1} parent=0
    #allocation2 [shape = 'u8[8192]{0}', space=vmem, size = 0x2000, scoped, tag = 'input window, operand 0']
    #allocation3 [shape = 's32[2]{0}', space=sflag, size = 0x8, scoped, tag = 'scoped memory for tpu_custom_call.1']
    #allocation4 [shape = 's32[2]{0}', space=sflag, size = 0x8, scoped, tag = 'scoped memory for tpu_custom_call.1']
    #allocation5 [shape = 'u8[16384]{0}', space=vmem, size = 0x4000, scoped, tag = 'input window, operand 1']
    #allocation6 [shape = 's32[2]{0}', space=sflag, size = 0x8, scoped, tag = 'scoped memory for tpu_custom_call.1']
    #allocation7 [shape = 'u8[8192]{0}', space=vmem, size = 0x2000, scoped, tag = 'output window, operand 0']
    #allocation8 [shape = 'u8[8192]{0}', space=vmem, size = 0x2000, scoped, tag = 'output window, operand 1']
    #allocation9 [shape = 's32[2]{0}', space=sflag, size = 0x8, scoped, tag = 'scoped memory for tpu_custom_call.1']
    %10 = vsyncpa [#allocation3], 0
    %s11 = scalar_lea.sflag [#allocation3], 1
    %12 = vsyncpa %s11, 0
    %13 = vsyncpa [#allocation6], 0
    %s14 = scalar_lea.sflag [#allocation6], 1
    %15 = vsyncpa %s14, 0
    %16 = vsyncpa [#allocation4], 0
    %s17 = scalar_lea.sflag [#allocation4], 1
    %18 = vsyncpa %s17, 0
    %19 = vsyncpa [#allocation9], 0
    %s20 = scalar_lea.sflag [#allocation9], 1
    %21 = vsyncpa %s20, 0
    loop: start=0, step=1, limit=4
    $region2: #{tpu_custom_call.1} parent=1 // loop_pre_header
      _
    $region3: #{tpu_custom_call.1} parent=1 // loop_header
      %s23 = sphi 0, %s27
      %p24 = scmp.ge.s32.totalorder %s23, 4
      %s30 = sphi 0, %s42
      %s31 = sphi 0, %s38
      %s32 = sphi 0, %s30
      %s33 = sphi 0, %s31
      %s34 = sphi 0, %s32
      %s35 = sphi 0, %s33
      %s47 = sphi 0, %s49
      %s50 = sphi 0, %s47
      %s51 = sphi 0, %s50
      %s67 = sphi 0, %s51
      %s73 = sphi 0, %s75
      %s76 = sphi 0, %s73
      %s77 = sphi 0, %s76
      %s93 = sphi 0, %s77
      %s99 = sphi 0, %s101
      %s102 = sphi 0, %s99
      %s103 = sphi 0, %s102
      %s119 = sphi 0, %s103
      %s127 = sphi 0, %s129
      %s130 = sphi 0, %s127
      %s131 = sphi 0, %s130
      %s147 = sphi 0, %s131
      %s155 = sphi 0, %s157
      %s158 = sphi 0, %s155
      %s159 = sphi 0, %s158
      %s175 = sphi 0, %s159
    $region4: #{tpu_custom_call.1} parent=1 // loop_header_branch
      %26 = sbr.rel (%p24) target = $region8
    $region5: #{tpu_custom_call.1} parent=1 // loop_body
      %s28 = ssub.s32 %s23, 1
      %s29 = ssub.s32 %s23, 2
      %s36 = sadd.s32 1, %s31
      %p37 = scmp.ge.s32.totalorder %s36, 1
      %s38 = scalar_select %p37, 0, %s36
      %s39 = sadd.s32 1, %s30
      %s40 = scalar_select %p37, %s39, %s30
      %p41 = scmp.ge.s32.totalorder %s40, 2
      %s42 = scalar_select %p41, 0, %s40
      %s43 = ssub.s32 %s30, %s42
      %s44 = ssub.s32 %s31, %s38
      %s45 = sor.u32 %s43, %s44
      %p46 = scmp.eq.s32.totalorder %s45, 0
      %s48 = sadd.s32 %s47, 1
      %s49 = scalar_select %p46, %s47, %s48
      %p52 = pneg %p46
      %p53 = scmp.eq.s32.totalorder %s23, 1
      %p54 = por %p52, %p53
      %p55 = scmp.ne.s32.totalorder %s47, %s50
      %p56 = scmp.eq.s32.totalorder %s23, 0
      %p57 = por %p55, %p56
      %p58 = scmp.ne.s32.totalorder %s47, %s50
      %p59 = scmp.eq.s32.totalorder %s28, 1
      %p60 = por %p58, %p59
      %p61 = scmp.ne.s32.totalorder %s50, %s51
      %p62 = scmp.eq.s32.totalorder %s28, 0
      %p63 = por %p61, %p62
      %p64 = scmp.ne.s32.totalorder %s50, %s51
      %p65 = scmp.eq.s32.totalorder %s29, 1
      %p66 = por %p64, %p65
      %p68 = scmp.ne.s32.totalorder %s51, %s67
      %p69 = scmp.eq.s32.totalorder %s29, 0
      %p70 = por %p68, %p69
      %s71 = ssub.s32 %s30, %s42
      %p72 = scmp.eq.s32.totalorder %s71, 0
      %s74 = sadd.s32 %s73, 1
      %s75 = scalar_select %p72, %s73, %s74
      %p78 = pneg %p72
      %p79 = scmp.eq.s32.totalorder %s23, 1
      %p80 = por %p78, %p79
      %p81 = scmp.ne.s32.totalorder %s73, %s76
      %p82 = scmp.eq.s32.totalorder %s23, 0
      %p83 = por %p81, %p82
      %p84 = scmp.ne.s32.totalorder %s73, %s76
      %p85 = scmp.eq.s32.totalorder %s28, 1
      %p86 = por %p84, %p85
      %p87 = scmp.ne.s32.totalorder %s76, %s77
      %p88 = scmp.eq.s32.totalorder %s28, 0
      %p89 = por %p87, %p88
      %p90 = scmp.ne.s32.totalorder %s76, %s77
      %p91 = scmp.eq.s32.totalorder %s29, 1
      %p92 = por %p90, %p91
      %p94 = scmp.ne.s32.totalorder %s77, %s93
      %p95 = scmp.eq.s32.totalorder %s29, 0
      %p96 = por %p94, %p95
      %s97 = ssub.s32 %s30, %s42
      %p98 = scmp.eq.s32.totalorder %s97, 0
      %s100 = sadd.s32 %s99, 1
      %s101 = scalar_select %p98, %s99, %s100
      %p104 = pneg %p98
      %p105 = scmp.eq.s32.totalorder %s23, 1
      %p106 = por %p104, %p105
      %p107 = scmp.ne.s32.totalorder %s99, %s102
      %p108 = scmp.eq.s32.totalorder %s23, 0
      %p109 = por %p107, %p108
      %p110 = scmp.ne.s32.totalorder %s99, %s102
      %p111 = scmp.eq.s32.totalorder %s28, 1
      %p112 = por %p110, %p111
      %p113 = scmp.ne.s32.totalorder %s102, %s103
      %p114 = scmp.eq.s32.totalorder %s28, 0
      %p115 = por %p113, %p114
      %p116 = scmp.ne.s32.totalorder %s102, %s103
      %p117 = scmp.eq.s32.totalorder %s29, 1
      %p118 = por %p116, %p117
      %p120 = scmp.ne.s32.totalorder %s103, %s119
      %p121 = scmp.eq.s32.totalorder %s29, 0
      %p122 = por %p120, %p121
      %s123 = ssub.s32 %s30, %s42
      %s124 = ssub.s32 %s31, %s38
      %s125 = sor.u32 %s123, %s124
      %p126 = scmp.eq.s32.totalorder %s125, 0
      %s128 = sadd.s32 %s127, 1
      %s129 = scalar_select %p126, %s127, %s128
      %p132 = pneg %p126
      %p133 = scmp.eq.s32.totalorder %s23, 1
      %p134 = por %p132, %p133
      %p135 = scmp.ne.s32.totalorder %s127, %s130
      %p136 = scmp.eq.s32.totalorder %s23, 0
      %p137 = por %p135, %p136
      %p138 = scmp.ne.s32.totalorder %s127, %s130
      %p139 = scmp.eq.s32.totalorder %s28, 1
      %p140 = por %p138, %p139
      %p141 = scmp.ne.s32.totalorder %s130, %s131
      %p142 = scmp.eq.s32.totalorder %s28, 0
      %p143 = por %p141, %p142
      %p144 = scmp.ne.s32.totalorder %s130, %s131
      %p145 = scmp.eq.s32.totalorder %s29, 1
      %p146 = por %p144, %p145
      %p148 = scmp.ne.s32.totalorder %s131, %s147
      %p149 = scmp.eq.s32.totalorder %s29, 0
      %p150 = por %p148, %p149
      %s151 = ssub.s32 %s30, %s42
      %s152 = ssub.s32 %s31, %s38
      %s153 = sor.u32 %s151, %s152
      %p154 = scmp.eq.s32.totalorder %s153, 0
      %s156 = sadd.s32 %s155, 1
      %s157 = scalar_select %p154, %s155, %s156
      %p160 = pneg %p154
      %p161 = scmp.eq.s32.totalorder %s23, 1
      %p162 = por %p160, %p161
      %p163 = scmp.ne.s32.totalorder %s155, %s158
      %p164 = scmp.eq.s32.totalorder %s23, 0
      %p165 = por %p163, %p164
      %p166 = scmp.ne.s32.totalorder %s155, %s158
      %p167 = scmp.eq.s32.totalorder %s28, 1
      %p168 = por %p166, %p167
      %p169 = scmp.ne.s32.totalorder %s158, %s159
      %p170 = scmp.eq.s32.totalorder %s28, 0
      %p171 = por %p169, %p170
      %p172 = scmp.ne.s32.totalorder %s158, %s159
      %p173 = scmp.eq.s32.totalorder %s29, 1
      %p174 = por %p172, %p173
      %p176 = scmp.ne.s32.totalorder %s159, %s175
      %p177 = scmp.eq.s32.totalorder %s29, 0
      %p178 = por %p176, %p177
      %p179 = scmp.le.s32.totalorder 1, %s23
      %p180 = scmp.lt.s32.totalorder %s23, 3
      %p181 = pnand %p179, %p180
      %p182 = pneg %p181
      // Predicated region
      $region9: #{tpu_custom_call.1} parent=5 // pred_check
        _
      $region10: #{tpu_custom_call.1} parent=5 // pred_check_branch
        %184 = sbr.rel (%p181) target = $region12
      $region11: #{tpu_custom_call.1} parent=5 // pred_region
        %s185 = ssub.s32 %s23, 1
      $region12: #{tpu_custom_call.1} parent=5 // pred_fallthru
        _
      %p186 = scmp.lt.s32.totalorder %s23, 2
      // Predicated region
      $region13: #{tpu_custom_call.1} parent=5 // pred_check
        %p187 = pneg %p186
      $region14: #{tpu_custom_call.1} parent=5 // pred_check_branch
        %189 = sbr.rel (%p187) target = $region16
      $region15: #{tpu_custom_call.1} parent=5 // pred_region
        // Predicated region
        $region17: #{tpu_custom_call.1} parent=15 // pred_check
          %p190 = pneg %p57
        $region18: #{tpu_custom_call.1} parent=15 // pred_check_branch
          %192 = sbr.rel (%p190) target = $region20
        $region19: #{tpu_custom_call.1} parent=15 // pred_region
          %s193 = sand.u32 %s47, 1
          %s194 = scalar_lea.sflag [#allocation3], %s193
          %s195 = sand.u32 %s47, 1
          %s196 = smul.addr %s195, 8
          %s197 = scalar_lea.vmem [#allocation2], %s196
          %199 = vsyncadd %s194, 0
          %s200 = sadd.s32 %s31, %s30
          %s201 = smul.addr %s200, 8
          %s202 = scalar_lea.hbm %s0, %s201
          %s204 = sshll.u32 %s202, 4
          %s205 = int_to_ptr.hbm [resolvable:$true] %s204
          %s206 = sshll.u32 %s197, 4
          %s207 = int_to_ptr.vmem [resolvable:$true] %s206
          %209 = dma.hbm_to_vmem [thread:$0]  %s205, 128, %s207, %s194
        $region20: #{tpu_custom_call.1} parent=15 // pred_fallthru
          _
        // Predicated region
        $region21: #{tpu_custom_call.1} parent=15 // pred_check
          %p210 = pneg %p83
        $region22: #{tpu_custom_call.1} parent=15 // pred_check_branch
          %212 = sbr.rel (%p210) target = $region24
        $region23: #{tpu_custom_call.1} parent=15 // pred_region
          %s213 = sand.u32 %s73, 1
          %s214 = scalar_lea.sflag [#allocation6], %s213
          %s215 = sand.u32 %s73, 1
          %s216 = smul.addr %s215, 16
          %s217 = scalar_lea.vmem [#allocation5], %s216
          %219 = vsyncadd %s214, 0
          %s220 = smul.addr %s30, 2
          %s221 = smul.addr %s220, 8
          %s222 = scalar_lea.hbm %s1, %s221
          %s223 = sshll.u32 %s222, 4
          %s224 = int_to_ptr.hbm [resolvable:$true] %s223
          %s225 = sshll.u32 %s217, 4
          %s226 = int_to_ptr.vmem [resolvable:$true] %s225
          %231 = dma.hbm_to_vmem [thread:$0]  %s224, 256, %s226, %s214, 128, 128, 8
        $region24: #{tpu_custom_call.1} parent=15 // pred_fallthru
          _
        // Predicated region
        $region25: #{tpu_custom_call.1} parent=15 // pred_check
          %p232 = pneg %p109
        $region26: #{tpu_custom_call.1} parent=15 // pred_check_branch
          %234 = sbr.rel (%p232) target = $region28
        $region27: #{tpu_custom_call.1} parent=15 // pred_region
          %p235 = scmp.lt.s32.totalorder %s30, 1
          %s236 = scalar_select %p235, %s30, 1
          %s237 = scalar_lea.vmem %s2, %s236
        $region28: #{tpu_custom_call.1} parent=15 // pred_fallthru
          _
      $region16: #{tpu_custom_call.1} parent=5 // pred_fallthru
        _
      %p238 = scmp.le.s32.totalorder 1, %s23
      %p239 = scmp.lt.s32.totalorder %s23, 3
      %p240 = pnand %p238, %p239
      %p241 = pneg %p240
      // Predicated region
      $region29: #{tpu_custom_call.1} parent=5 // pred_check
        _
      $region30: #{tpu_custom_call.1} parent=5 // pred_check_branch
        %243 = sbr.rel (%p240) target = $region32
      $region31: #{tpu_custom_call.1} parent=5 // pred_region
        %s244 = ssub.s32 %s23, 1
        %s245 = sand.u32 %s50, 1
        %s246 = scalar_lea.sflag [#allocation3], %s245
        %s247 = sand.u32 %s50, 1
        %s248 = smul.addr %s247, 8
        %s249 = scalar_lea.vmem [#allocation2], %s248
        // Predicated region
        $region33: #{tpu_custom_call.1} parent=31 // pred_check
          %p250 = pneg %p63
        $region34: #{tpu_custom_call.1} parent=31 // pred_check_branch
          %252 = sbr.rel (%p250) target = $region36
        $region35: #{tpu_custom_call.1} parent=31 // pred_region
          %254 = dma.done %s246, 128
        $region36: #{tpu_custom_call.1} parent=31 // pred_fallthru
          _
        %s255 = sand.u32 %s76, 1
        %s256 = scalar_lea.sflag [#allocation6], %s255
        %s257 = sand.u32 %s76, 1
        %s258 = smul.addr %s257, 16
        %s259 = scalar_lea.vmem [#allocation5], %s258
        // Predicated region
        $region37: #{tpu_custom_call.1} parent=31 // pred_check
          %p260 = pneg %p89
        $region38: #{tpu_custom_call.1} parent=31 // pred_check_branch
          %262 = sbr.rel (%p260) target = $region40
        $region39: #{tpu_custom_call.1} parent=31 // pred_region
          %264 = dma.done %s256, 256
        $region40: #{tpu_custom_call.1} parent=31 // pred_fallthru
          _
        %s265 = sand.u32 %s50, 1
        %s266 = scalar_lea.sflag [#allocation3], %s265
        %s267 = sand.u32 %s50, 1
        %s268 = smul.addr %s267, 8
        %s269 = scalar_lea.vmem [#allocation2], %s268
        %p270 = pneg %p63
        %p271 = pneg %p60
        %s272 = sand.u32 %s76, 1
        %s273 = scalar_lea.sflag [#allocation6], %s272
        %s274 = sand.u32 %s76, 1
        %s275 = smul.addr %s274, 16
        %s276 = scalar_lea.vmem [#allocation5], %s275
        %p277 = pneg %p89
        %p278 = pneg %p86
        %p279 = scmp.lt.s32.totalorder %s32, 1
        %s280 = scalar_select %p279, %s32, 1
        %s281 = scalar_lea.vmem %s2, %s280
        %p282 = pneg %p115
        %p283 = pneg %p112
        %p284 = pneg %p143
        %p285 = pneg %p140
        %s286 = sand.u32 %s130, 1
        %s287 = scalar_lea.sflag [#allocation4], %s286
        %s288 = sand.u32 %s130, 1
        %s289 = smul.addr %s288, 8
        %s290 = scalar_lea.vmem [#allocation7], %s289
        %p291 = pneg %p171
        %p292 = pneg %p168
        %s293 = sand.u32 %s158, 1
        %s294 = scalar_lea.sflag [#allocation9], %s293
        %s295 = sand.u32 %s158, 1
        %s296 = smul.addr %s295, 8
        %s297 = scalar_lea.vmem [#allocation8], %s296
        %p298 = scmp.lt.s32.totalorder %s32, 1
        %s299 = scalar_select %p298, %s32, 1
        %s300 = scalar_lea.vmem %s2, %s299
        %v301 = vld [vmem:[%s249] sm:$0xff]
        %v302 = vld [vmem:[%s259] sm:$0xff]
        %v303 = vld [vmem:[%s259 + $0x8] sm:$0xff]
        %v304 = vmul.f32 %v301, 0.17677669
        %vm305 = vcmask 261120
        %v307 = vsel %vm305, %v304, 0
        %v310 = vsel %vm305, %v302, 0
        %v313 = vsel %vm305, %v303, 0
        %315 = vmatpush.xpose.msra.mxu0 0.0
        %316 = vmatpush.xpose.msra.mxu0 0.0
        %317 = vmatpush.xpose.msra.mxu0 0.0
        %318 = vmatpush.xpose.msra.mxu0 0.0
        %319 = vmatpush.xpose.msra.mxu0 0.0
        %320 = vmatpush.xpose.msra.mxu0 0.0
        %321 = vmatpush.xpose.msra.mxu0 0.0
        %322 = vmatpush.xpose.msra.mxu0 0.0
        %323 = vmatpush.xpose.msra.mxu0 0.0
        %324 = vmatpush.xpose.msra.mxu0 0.0
        %325 = vmatpush.xpose.msra.mxu0 0.0
        %326 = vmatpush.xpose.msra.mxu0 0.0
        %327 = vmatpush.xpose.msra.mxu0 0.0
        %328 = vmatpush.xpose.msra.mxu0 0.0
        %329 = vmatpush.xpose.msra.mxu0 %v313
        %330 = vmatpush.xpose.msra.mxu0 %v310
        %331 = vmatmul.f32.gmra.mxu0 %v307
        %v332 = vpop.f32.mrf.mxu0
        %v333 = vadd.f32 0.0, %v332
        %334 = vdwg.mxu0
        %v335 = vlaneseq
        %v336 = vand.u32 %v335, 127
        %v337 = vld [vmem:[%s300] sm:$0x1]
        %338 = vset.pattern.permute.xlu0 0
        %339 = vperm.xlu0 %338, %v337
        %v340 = vpop.permute.xlu0 %339
        %v341 = vperm.slane %v340, 0
        %vm342 = vcmp.ge.s32.totalorder %v336, %v341
        %v343 = vsel %vm342, 1, 0
        %vm344 = vcmp.eq.s32.totalorder %v343, 1
        %v345 = vsel %vm344, -inf, %v333
        %vm346 = vcmask 130048
        %v347 = vsel %vm346, %v345, -inf
        %348 = vmax.xlane.f32.xlu0 %v347
        %v349 = vpop.xlane.xlu0 %348
        %v350 = vsub.f32 %v345, %v349
        %v351 = vmul.f32 %v350, 1.442695
        %v352 = vpow.pop %v351
        %v353 = vsel %vm346, %v352, 0.0
        %354 = vadd.xlane.f32.xlu0 %v353
        %v355 = vpop.xlane.xlu0 %354
        %v356 = vrcp.pop %v355
        %v357 = vmul.f32 %v355, %v356
        %v358 = vsub.f32 1.0, %v357
        %v359 = vmul.f32 %v356, %v358
        %v360 = vadd.f32 %v356, %v359
        %vm361 = vweird.f32 %v355
        %vm362 = vweird.f32 %v356
        %vm363 = vmor %vm361, %vm362
        %v364 = vsel %vm363, %v356, %v360
        %v365 = vand.u32 2147483647, %v355
        %vm366 = vcmp.eq.f32.partialorder %v365, 8.507059e+37
        %v367 = vand.u32 %v355, 2147483648
        %v368 = vor.u32 1.1754944e-38, %v367
        %v369 = vsel %vm366, %v368, %v364
        %v370 = vmul.f32 1.0, %v369
        %v371 = vmul.f32 %v352, %v370
        %372 = vst.msk [vmem:[%s297] sm:$0xff] %vm346, %v371
        %v374 = vsel %vm346, %v371, 0
        %376 = vmatpush.msra.mxu0 0.0
        %377 = vmatpush.msra.mxu0 0.0
        %378 = vmatpush.msra.mxu0 0.0
        %379 = vmatpush.msra.mxu0 0.0
        %380 = vmatpush.msra.mxu0 0.0
        %381 = vmatpush.msra.mxu0 0.0
        %382 = vmatpush.msra.mxu0 0.0
        %383 = vmatpush.msra.mxu0 0.0
        %384 = vmatpush.msra.mxu0 0.0
        %385 = vmatpush.msra.mxu0 0.0
        %386 = vmatpush.msra.mxu0 0.0
        %387 = vmatpush.msra.mxu0 0.0
        %388 = vmatpush.msra.mxu0 0.0
        %389 = vmatpush.msra.mxu0 0.0
        %390 = vmatpush.msra.mxu0 %v303
        %391 = vmatpush.msra.mxu0 %v302
        %392 = vmatmul.f32.gmra.mxu0 %v374
        %v393 = vpop.f32.mrf.mxu0
        %v394 = vadd.f32 0.0, %v393
        %395 = vdwg.mxu0
        %396 = vst.msk [vmem:[%s290] sm:$0xff] %vm305, %v394
        %s397 = sand.u32 %s130, 1
        %s398 = scalar_lea.sflag [#allocation4], %s397
        %s399 = sand.u32 %s130, 1
        %s400 = smul.addr %s399, 8
        %s401 = scalar_lea.vmem [#allocation7], %s400
        %s402 = sand.u32 %s158, 1
        %s403 = scalar_lea.sflag [#allocation9], %s402
        %s404 = sand.u32 %s158, 1
        %s405 = smul.addr %s404, 8
        %s406 = scalar_lea.vmem [#allocation8], %s405
        // Predicated region
        $region41: #{tpu_custom_call.1} parent=31 // pred_check
          %p407 = pneg %p140
        $region42: #{tpu_custom_call.1} parent=31 // pred_check_branch
          %409 = sbr.rel (%p407) target = $region44
        $region43: #{tpu_custom_call.1} parent=31 // pred_region
          %411 = vsyncadd %s398, 0
          %s412 = sadd.s32 %s33, %s32
          %s413 = smul.addr %s412, 8
          %s414 = scalar_lea.hbm %s3, %s413
          %s416 = sshll.u32 %s401, 4
          %s417 = int_to_ptr.vmem [resolvable:$true] %s416
          %s418 = sshll.u32 %s414, 4
          %s419 = int_to_ptr.hbm [resolvable:$true] %s418
          %421 = dma.vmem_to_hbm [thread:$0]  %s417, 128, %s419, %s398
        $region44: #{tpu_custom_call.1} parent=31 // pred_fallthru
          _
        // Predicated region
        $region45: #{tpu_custom_call.1} parent=31 // pred_check
          %p422 = pneg %p168
        $region46: #{tpu_custom_call.1} parent=31 // pred_check_branch
          %424 = sbr.rel (%p422) target = $region48
        $region47: #{tpu_custom_call.1} parent=31 // pred_region
          %426 = vsyncadd %s403, 0
          %s427 = sadd.s32 %s33, %s32
          %s428 = smul.addr %s427, 8
          %s429 = scalar_lea.hbm %s4, %s428
          %s431 = sshll.u32 %s406, 4
          %s432 = int_to_ptr.vmem [resolvable:$true] %s431
          %s433 = sshll.u32 %s429, 4
          %s434 = int_to_ptr.hbm [resolvable:$true] %s433
          %436 = dma.vmem_to_hbm [thread:$0]  %s432, 128, %s434, %s403
        $region48: #{tpu_custom_call.1} parent=31 // pred_fallthru
          _
      $region32: #{tpu_custom_call.1} parent=5 // pred_fallthru
        _
      %p437 = scmp.le.s32.totalorder 2, %s23
      // Predicated region
      $region49: #{tpu_custom_call.1} parent=5 // pred_check
        %p438 = pneg %p437
      $region50: #{tpu_custom_call.1} parent=5 // pred_check_branch
        %440 = sbr.rel (%p438) target = $region52
      $region51: #{tpu_custom_call.1} parent=5 // pred_region
        %s441 = ssub.s32 %s23, 2
        // Predicated region
        $region53: #{tpu_custom_call.1} parent=51 // pred_check
          %p442 = pneg %p146
        $region54: #{tpu_custom_call.1} parent=51 // pred_check_branch
          %444 = sbr.rel (%p442) target = $region56
        $region55: #{tpu_custom_call.1} parent=51 // pred_region
          %s445 = sand.u32 %s131, 1
          %s446 = scalar_lea.sflag [#allocation4], %s445
          %s447 = sand.u32 %s131, 1
          %s448 = smul.addr %s447, 8
          %s449 = scalar_lea.vmem [#allocation7], %s448
          %451 = dma.done %s446, 128
        $region56: #{tpu_custom_call.1} parent=51 // pred_fallthru
          _
        // Predicated region
        $region57: #{tpu_custom_call.1} parent=51 // pred_check
          %p452 = pneg %p174
        $region58: #{tpu_custom_call.1} parent=51 // pred_check_branch
          %454 = sbr.rel (%p452) target = $region60
        $region59: #{tpu_custom_call.1} parent=51 // pred_region
          %s455 = sand.u32 %s159, 1
          %s456 = scalar_lea.sflag [#allocation9], %s455
          %s457 = sand.u32 %s159, 1
          %s458 = smul.addr %s457, 8
          %s459 = scalar_lea.vmem [#allocation8], %s458
          %461 = dma.done %s456, 128
        $region60: #{tpu_custom_call.1} parent=51 // pred_fallthru
          _
      $region52: #{tpu_custom_call.1} parent=5 // pred_fallthru
        _
    $region6: #{tpu_custom_call.1} parent=1 // loop_footer
      %s27 = sadd.s32 1, %s23
    $region7: #{tpu_custom_call.1} parent=1 // loop_footer_branch
      %22 = sbr.rel target = $region3
    $region8: #{tpu_custom_call.1} parent=1 // loop_exit
      _
    %462 = vsyncpa [#allocation3], 1
    %s463 = scalar_lea.sflag [#allocation3], 1
    %464 = vsyncpa %s463, 1
    %465 = vsyncpa [#allocation6], 1
    %s466 = scalar_lea.sflag [#allocation6], 1
    %467 = vsyncpa %s466, 1
    %468 = vsyncpa [#allocation4], 1
    %s469 = scalar_lea.sflag [#allocation4], 1
    %470 = vsyncpa %s469, 1
    %471 = vsyncpa [#allocation9], 1
    %s472 = scalar_lea.sflag [#allocation9], 1
    %473 = vsyncpa %s472, 1

</llo_original>
